<compile_context>
chip_gen: v7x
topology: tpu7x:2x2x1
jax: 0.10.0
libtpu: 0.0.40
codegen_flags: <defaults>
</compile_context>

<pallas_src>
import functools

import jax
import jax.numpy as jnp
from jax.experimental import pallas as pl
from jax.experimental.pallas import tpu as pltpu

LANE = 128      # lane width of a vreg (last dim)
SUBLANE = 8     # sublane count of a vreg (second-to-last dim)


def _round_up(n, m):
    return ((n + m - 1) // m) * m


def _fcn_kernel(num_hidden, x_ref, w_in_ref, b_in_ref, *rest):
    """One batch tile of the whole network. All weights are VMEM-resident."""
    if num_hidden > 0:
        wh_ref, bh_ref, w_out_ref, b_out_ref, out_ref = rest
    else:
        w_out_ref, b_out_ref, out_ref = rest
        wh_ref = bh_ref = None

    def linear(h, w, b):
        # Only the MXU operands may be bf16; accumulation is f32 via
        # preferred_element_type and the bias add stays f32.
        return jnp.dot(h.astype(w.dtype), w,
                       preferred_element_type=jnp.float32) + b

    # Input layer + tanh (tanh runs on the EUP in f32).
    h = jnp.tanh(linear(x_ref[...], w_in_ref[...], b_in_ref[...]))

    # (N_LAYERS - 1) hidden layers + tanh; weights stacked as [L-1, H, H].
    # Static unroll (num_hidden is a Python int; small depth -> LLO visibility).
    for l in range(num_hidden):
        h = jnp.tanh(linear(h, wh_ref[l], bh_ref[l]))

    # Output layer, no activation.  Output width is the true n_output (tiny),
    # so the store is a narrow masked vst but HBM write traffic is minimal.
    y = linear(h, w_out_ref[...], b_out_ref[...])
    out_ref[...] = y.astype(out_ref.dtype)


def init_fcn_params(key, n_input, n_output, n_hidden, n_layers):
    """Deterministic init mimicking nn.Linear's U(-1/sqrt(fan_in), 1/sqrt(fan_in)).

    Weights are stored transposed relative to PyTorch: [in, out].
    Biases are stored as [1, out].
    """
    params = []
    dims = ([(n_input, n_hidden)] + [(n_hidden, n_hidden)] * (n_layers - 1)
            + [(n_hidden, n_output)])
    for (fan_in, fan_out) in dims:
        key, kw, kb = jax.random.split(key, 3)
        bound = 1.0 / jnp.sqrt(jnp.float32(fan_in))
        w = jax.random.uniform(kw, (fan_in, fan_out), jnp.float32, -bound, bound)
        b = jax.random.uniform(kb, (1, fan_out), jnp.float32, -bound, bound)
        params.append((w, b))
    return params


def prepare_params(params):
    """One-time packing.

    Only the HIDDEN feature axis is zero-padded to a multiple of 128 lanes
    (those arrays are small and VMEM-resident); the streamed x feature axis and
    the output feature axis keep their true widths to minimize HBM traffic.
    The (L-1) hidden layers are stacked into one [L-1, H, H] weight array
    (+ [L-1, 1, H] biases) so there are fewer pallas_call operands.

    Zero padding preserves the math exactly: padded weight columns/rows and
    padded biases are zero, so padded hidden lanes carry tanh(0) = 0 through
    the whole network and contribute nothing to the output.
    """
    (w0, b0), hidden, (we, be) = params[0], params[1:-1], params[-1]
    n_input, n_hidden = w0.shape
    n_output = we.shape[1]
    hid_p = _round_up(n_hidden, LANE)

    def pad2(a, rows, cols):
        out = jnp.zeros((rows, cols), jnp.float32)
        return out.at[:a.shape[0], :a.shape[1]].set(a.astype(jnp.float32))

    w_in = pad2(w0, n_input, hid_p)      # K axis unpadded, hidden lanes padded
    b_in = pad2(b0, 1, hid_p)

    num_hidden = len(hidden)
    if num_hidden > 0:
        wh = jnp.stack([pad2(w, hid_p, hid_p) for (w, _) in hidden])
        bh = jnp.stack([pad2(b, 1, hid_p) for (_, b) in hidden])
    else:
        wh = None
        bh = None

    w_out = pad2(we, hid_p, n_output)    # hidden rows padded, output cols true
    b_out = be.astype(jnp.float32)       # (1, n_output), unpadded

    packed = (w_in, b_in, wh, bh, w_out, b_out)
    meta = (n_input, n_hidden, n_output, num_hidden)
    return packed, meta


def fcn_forward(x, packed, meta, *, tile_b=2048, use_bf16=False):
    """Full FCN forward pass as one batch-tiled Pallas kernel.

    tile_b: rows per grid step.  Large (up to 2048) to amortize per-step
            overhead; the f32 activations (tile_b x 128) are a couple of MiB of
            VMEM at most, far below every generation's budget.  The tile is
            capped so the grid keeps >= 2 steps when the batch allows it
            (v7x megacore sharding of the "parallel" batch axis).
    """
    w_in, b_in, wh, bh, w_out, b_out = packed
    n_input, n_hidden, n_output, num_hidden = meta
    batch = x.shape[0]
    hid_p = w_in.shape[1]

    compute_dtype = jnp.bfloat16 if use_bf16 else jnp.float32
    if use_bf16:
        # Only MXU operands go bf16; biases (bias add) stay f32.
        w_in = w_in.astype(jnp.bfloat16)
        w_out = w_out.astype(jnp.bfloat16)
        if wh is not None:
            wh = wh.astype(jnp.bfloat16)

    # Batch tile: multiple of 8 sublanes, no larger than the (padded) batch,
    # and small enough that the grid has >= 2 steps when possible.
    batch_p = _round_up(batch, SUBLANE)
    tb = max(SUBLANE, min(_round_up(tile_b, SUBLANE), batch_p))
    if batch_p >= 2 * SUBLANE:
        tb = min(tb, _round_up((batch_p + 1) // 2, SUBLANE))
    padded_batch = _round_up(batch, tb)
    grid = (padded_batch // tb,)

    # Pad x only along the batch rows; the feature axis stays at n_input so the
    # streamed input DMA carries only real data (no 32x lane-padding blowup).
    xp = jnp.zeros((padded_batch, n_input), compute_dtype)
    xp = xp.at[:batch, :].set(x.astype(compute_dtype))

    kernel = functools.partial(_fcn_kernel, num_hidden)

    # Streamed x tile: new block each grid step (double-buffered by Pallas).
    in_specs = [pl.BlockSpec((tb, n_input), lambda i: (i, 0)),
                # weights / biases: constant block index -> VMEM-resident.
                pl.BlockSpec(w_in.shape, lambda i: (0, 0)),
                pl.BlockSpec(b_in.shape, lambda i: (0, 0))]
    operands = [xp, w_in, b_in]
    if num_hidden > 0:
        in_specs += [pl.BlockSpec(wh.shape, lambda i: (0, 0, 0)),
                     pl.BlockSpec(bh.shape, lambda i: (0, 0, 0))]
        operands += [wh, bh]
    in_specs += [pl.BlockSpec(w_out.shape, lambda i: (0, 0)),
                 pl.BlockSpec(b_out.shape, lambda i: (0, 0))]
    operands += [w_out, b_out]

    # Real work estimate (scheduling hint for XLA around the custom call).
    itemsize = 2 if use_bf16 else 4
    flops = 2 * padded_batch * (n_input * hid_p
                                + num_hidden * hid_p * hid_p
                                + hid_p * n_output)
    transcendentals = padded_batch * hid_p * (num_hidden + 1)
    weight_bytes = sum(int(a.size) * a.dtype.itemsize for a in operands[1:])
    bytes_accessed = (padded_batch * n_input * itemsize      # streamed x
                      + padded_batch * n_output * 4          # streamed out (f32)
                      + weight_bytes)
    cost = pl.CostEstimate(flops=int(flops),
                           transcendentals=int(transcendentals),
                           bytes_accessed=int(bytes_accessed))

    out_padded = pl.pallas_call(
        kernel,
        out_shape=jax.ShapeDtypeStruct((padded_batch, n_output), jnp.float32),
        grid=grid,
        in_specs=in_specs,
        # True-width output (full-extent last dim): masked vst, minimal HBM writes.
        out_specs=pl.BlockSpec((tb, n_output), lambda i: (i, 0)),
        compiler_params=pltpu.CompilerParams(
            # Batch tiles are independent -> shard across TCs on v7x megacore.
            dimension_semantics=("parallel",),
        ),
        cost_estimate=cost,
    )(*operands)

    # Strip the batch padding back to the logical output shape.
    return out_padded[:batch, :]


def fcn_reference(x, params):
    """Pure-JAX reference matching the PyTorch forward."""
    h = x
    for (w, b) in params[:-1]:
        h = jnp.tanh(h @ w + b)
    w, b = params[-1]
    return h @ w + b


if __name__ == "__main__":
    # Small shapes consistent with the module (a typical PINN-style MLP).
    BATCH, N_INPUT, N_OUTPUT, N_HIDDEN, N_LAYERS = 8, 4, 2, 32, 3

    key = jax.random.PRNGKey(0)
    key, kx = jax.random.split(key)
    x = jax.random.normal(kx, (BATCH, N_INPUT), jnp.float32)

    params = init_fcn_params(key, N_INPUT, N_OUTPUT, N_HIDDEN, N_LAYERS)
    packed, meta = prepare_params(params)

    # 1) f32 path, single tile.
    out = jax.block_until_ready(fcn_forward(x, packed, meta))
    ref = fcn_reference(x, params)
    assert out.shape == (BATCH, N_OUTPUT), out.shape
    assert jnp.allclose(out, ref, atol=1e-5, rtol=1e-5), \
        float(jnp.max(jnp.abs(out - ref)))

    # 2) Multi-tile grid path (batch not a multiple of the tile).
    key, kx2 = jax.random.split(key)
    x2 = jax.random.normal(kx2, (300, N_INPUT), jnp.float32)
    out2 = jax.block_until_ready(fcn_forward(x2, packed, meta, tile_b=128))
    ref2 = fcn_reference(x2, params)
    assert out2.shape == (300, N_OUTPUT), out2.shape
    assert jnp.allclose(out2, ref2, atol=1e-5, rtol=1e-5), \
        float(jnp.max(jnp.abs(out2 - ref2)))

    # 3) bf16 operand path (f32 accumulation / f32 tanh) with loose tolerances.
    out3 = jax.block_until_ready(fcn_forward(x2, packed, meta, use_bf16=True))
    assert out3.shape == (300, N_OUTPUT), out3.shape
    assert jnp.allclose(out3, ref2, atol=5e-2, rtol=5e-2), \
        float(jnp.max(jnp.abs(out3 - ref2)))

    # 4) N_LAYERS == 1 (no hidden-to-hidden layers): specialized operand list.
    params1 = init_fcn_params(key, N_INPUT, N_OUTPUT, N_HIDDEN, 1)
    packed1, meta1 = prepare_params(params1)
    out4 = jax.block_until_ready(fcn_forward(x, packed1, meta1))
    ref4 = fcn_reference(x, params1)
    assert out4.shape == (BATCH, N_OUTPUT), out4.shape
    assert jnp.allclose(out4, ref4, atol=1e-5, rtol=1e-5), \
        float(jnp.max(jnp.abs(out4 - ref4)))

    print("KERNEL_OK")
</pallas_src>

<mosaic_0001>
module attributes {stable_mosaic.version = 11 : i64} {
  func.func @_fcn_kernel(%arg0: i32, %arg1: memref<8x4xf32, #tpu.memory_space<vmem>>, %arg2: memref<4x128xf32, #tpu.memory_space<vmem>>, %arg3: memref<1x128xf32, #tpu.memory_space<vmem>>, %arg4: memref<2x128x128xf32, #tpu.memory_space<vmem>>, %arg5: memref<2x1x128xf32, #tpu.memory_space<vmem>>, %arg6: memref<128x2xf32, #tpu.memory_space<vmem>>, %arg7: memref<1x2xf32, #tpu.memory_space<vmem>>, %arg8: memref<8x2xf32, #tpu.memory_space<vmem>>) attributes {dimension_semantics = [#tpu.dimension_semantics<parallel>], iteration_bounds = array<i64: 1>, scalar_prefetch = 0 : i64, scratch_operands = 0 : i64, tpu.core_type = #tpu.core_type<tc>, window_params = [{transform_indices = @transform_0, window_bounds = array<i64: 8, 4>}, {pipeline_mode = #tpu.pipeline_mode<synchronous>, transform_indices = @transform_1, window_bounds = array<i64: 4, 128>}, {pipeline_mode = #tpu.pipeline_mode<synchronous>, transform_indices = @transform_2, window_bounds = array<i64: 1, 128>}, {pipeline_mode = #tpu.pipeline_mode<synchronous>, transform_indices = @transform_3, window_bounds = array<i64: 2, 128, 128>}, {pipeline_mode = #tpu.pipeline_mode<synchronous>, transform_indices = @transform_4, window_bounds = array<i64: 2, 1, 128>}, {pipeline_mode = #tpu.pipeline_mode<synchronous>, transform_indices = @transform_5, window_bounds = array<i64: 128, 2>}, {pipeline_mode = #tpu.pipeline_mode<synchronous>, transform_indices = @transform_6, window_bounds = array<i64: 1, 2>}, {transform_indices = @transform_7, window_bounds = array<i64: 8, 2>}]} {
    %c0 = arith.constant 0 : index
    %c0_0 = arith.constant 0 : index
    %0 = vector.load %arg1[%c0, %c0_0] : memref<8x4xf32, #tpu.memory_space<vmem>>, vector<8x4xf32>
    %c0_1 = arith.constant 0 : index
    %c0_2 = arith.constant 0 : index
    %1 = vector.load %arg2[%c0_1, %c0_2] : memref<4x128xf32, #tpu.memory_space<vmem>>, vector<4x128xf32>
    %c0_3 = arith.constant 0 : index
    %c0_4 = arith.constant 0 : index
    %2 = vector.load %arg3[%c0_3, %c0_4] : memref<1x128xf32, #tpu.memory_space<vmem>>, vector<1x128xf32>
    %cst = arith.constant dense<0.000000e+00> : vector<8x128xf32>
    %3 = tpu.matmul %0, %1, %cst {dimension_numbers = #tpu.dot_dimension_numbers<[1], [0], [0], [1], [0, 0, 1, 1], [], []>} : vector<8x4xf32>, vector<4x128xf32>, vector<8x128xf32> -> vector<8x128xf32>
    %4 = vector.broadcast %2 : vector<1x128xf32> to vector<8x128xf32>
    %5 = arith.addf %3, %4 : vector<8x128xf32>
    %6 = math.tanh %5 : vector<8x128xf32>
    %c0_5 = arith.constant 0 : index
    %c0_6 = arith.constant 0 : index
    %c0_7 = arith.constant 0 : index
    %7 = vector.load %arg4[%c0_5, %c0_6, %c0_7] : memref<2x128x128xf32, #tpu.memory_space<vmem>>, vector<1x128x128xf32>
    %8 = vector.shape_cast %7 : vector<1x128x128xf32> to vector<128x128xf32>
    %c0_8 = arith.constant 0 : index
    %c0_9 = arith.constant 0 : index
    %c0_10 = arith.constant 0 : index
    %9 = vector.load %arg5[%c0_8, %c0_9, %c0_10] : memref<2x1x128xf32, #tpu.memory_space<vmem>>, vector<1x1x128xf32>
    %10 = vector.shape_cast %9 : vector<1x1x128xf32> to vector<1x128xf32>
    %cst_11 = arith.constant dense<0.000000e+00> : vector<8x128xf32>
    %11 = tpu.matmul %6, %8, %cst_11 {dimension_numbers = #tpu.dot_dimension_numbers<[1], [0], [0], [1], [0, 0, 1, 1], [], []>} : vector<8x128xf32>, vector<128x128xf32>, vector<8x128xf32> -> vector<8x128xf32>
    %12 = vector.broadcast %10 : vector<1x128xf32> to vector<8x128xf32>
    %13 = arith.addf %11, %12 : vector<8x128xf32>
    %14 = math.tanh %13 : vector<8x128xf32>
    %c1 = arith.constant 1 : index
    %c0_12 = arith.constant 0 : index
    %c0_13 = arith.constant 0 : index
    %15 = vector.load %arg4[%c1, %c0_12, %c0_13] : memref<2x128x128xf32, #tpu.memory_space<vmem>>, vector<1x128x128xf32>
    %16 = vector.shape_cast %15 : vector<1x128x128xf32> to vector<128x128xf32>
    %c1_14 = arith.constant 1 : index
    %c0_15 = arith.constant 0 : index
    %c0_16 = arith.constant 0 : index
    %17 = vector.load %arg5[%c1_14, %c0_15, %c0_16] : memref<2x1x128xf32, #tpu.memory_space<vmem>>, vector<1x1x128xf32>
    %18 = vector.shape_cast %17 : vector<1x1x128xf32> to vector<1x128xf32>
    %cst_17 = arith.constant dense<0.000000e+00> : vector<8x128xf32>
    %19 = tpu.matmul %14, %16, %cst_17 {dimension_numbers = #tpu.dot_dimension_numbers<[1], [0], [0], [1], [0, 0, 1, 1], [], []>} : vector<8x128xf32>, vector<128x128xf32>, vector<8x128xf32> -> vector<8x128xf32>
    %20 = vector.broadcast %18 : vector<1x128xf32> to vector<8x128xf32>
    %21 = arith.addf %19, %20 : vector<8x128xf32>
    %22 = math.tanh %21 : vector<8x128xf32>
    %c0_18 = arith.constant 0 : index
    %c0_19 = arith.constant 0 : index
    %23 = vector.load %arg6[%c0_18, %c0_19] : memref<128x2xf32, #tpu.memory_space<vmem>>, vector<128x2xf32>
    %c0_20 = arith.constant 0 : index
    %c0_21 = arith.constant 0 : index
    %24 = vector.load %arg7[%c0_20, %c0_21] : memref<1x2xf32, #tpu.memory_space<vmem>>, vector<1x2xf32>
    %cst_22 = arith.constant dense<0.000000e+00> : vector<8x2xf32>
    %25 = tpu.matmul %22, %23, %cst_22 {dimension_numbers = #tpu.dot_dimension_numbers<[1], [0], [0], [1], [0, 0, 1, 1], [], []>} : vector<8x128xf32>, vector<128x2xf32>, vector<8x2xf32> -> vector<8x2xf32>
    %26 = vector.broadcast %24 : vector<1x2xf32> to vector<8x2xf32>
    %27 = arith.addf %25, %26 : vector<8x2xf32>
    %c0_23 = arith.constant 0 : index
    %c0_24 = arith.constant 0 : index
    %28 = vector.load %arg8[%c0_23, %c0_24] : memref<8x2xf32, #tpu.memory_space<vmem>>, vector<8x2xf32>
    tpu.vector_store %arg8[%c0_23, %c0_24], %27 {strides = array<i32>} : memref<8x2xf32, #tpu.memory_space<vmem>>, vector<8x2xf32>,
    return
  }
  func.func @transform_0(%arg0: i32) -> (i32, i32) {
    %c0_i32 = arith.constant 0 : i32
    %c0_i32_0 = arith.constant 0 : i32
    return %arg0, %c0_i32 : i32, i32
  }
  func.func @transform_1(%arg0: i32) -> (i32, i32) {
    %c0_i32 = arith.constant 0 : i32
    %c0_i32_0 = arith.constant 0 : i32
    %c0_i32_1 = arith.constant 0 : i32
    return %c0_i32, %c0_i32_0 : i32, i32
  }
  func.func @transform_2(%arg0: i32) -> (i32, i32) {
    %c0_i32 = arith.constant 0 : i32
    %c0_i32_0 = arith.constant 0 : i32
    %c0_i32_1 = arith.constant 0 : i32
    return %c0_i32, %c0_i32_0 : i32, i32
  }
  func.func @transform_3(%arg0: i32) -> (i32, i32, i32) {
    %c0_i32 = arith.constant 0 : i32
    %c0_i32_0 = arith.constant 0 : i32
    %c0_i32_1 = arith.constant 0 : i32
    %c0_i32_2 = arith.constant 0 : i32
    return %c0_i32, %c0_i32_0, %c0_i32_1 : i32, i32, i32
  }
  func.func @transform_4(%arg0: i32) -> (i32, i32, i32) {
    %c0_i32 = arith.constant 0 : i32
    %c0_i32_0 = arith.constant 0 : i32
    %c0_i32_1 = arith.constant 0 : i32
    %c0_i32_2 = arith.constant 0 : i32
    return %c0_i32, %c0_i32_0, %c0_i32_1 : i32, i32, i32
  }
  func.func @transform_5(%arg0: i32) -> (i32, i32) {
    %c0_i32 = arith.constant 0 : i32
    %c0_i32_0 = arith.constant 0 : i32
    %c0_i32_1 = arith.constant 0 : i32
    return %c0_i32, %c0_i32_0 : i32, i32
  }
  func.func @transform_6(%arg0: i32) -> (i32, i32) {
    %c0_i32 = arith.constant 0 : i32
    %c0_i32_0 = arith.constant 0 : i32
    %c0_i32_1 = arith.constant 0 : i32
    return %c0_i32, %c0_i32_0 : i32, i32
  }
  func.func @transform_7(%arg0: i32) -> (i32, i32) {
    %c0_i32 = arith.constant 0 : i32
    %c0_i32_0 = arith.constant 0 : i32
    return %arg0, %c0_i32 : i32, i32
  }
}

</mosaic_0001>

<llo_original>
// kernel: tpu_custom_call.1
$region0: #{tpu_custom_call.1}
  #allocation0 [shape = 'u32[]', space=smem, size = 0x4, offset = 0x4, fixed_abs, tag = 'smem constant byte address 0x4 - core index']
  #allocation1 [shape = 'u32[144,128]{1,0:T(1,128)}', space=vmem, size = 0x12000, scoped, tag = 'internal scratch']
  %s0 = inlined_call_operand.vmem [shape: f32[8,4], index: 0, kind: input, shape index: {}]
  %s1 = inlined_call_operand.vmem [shape: f32[4,128], index: 1, kind: input, shape index: {}]
  %s2 = inlined_call_operand.vmem [shape: f32[1,128], index: 2, kind: input, shape index: {}]
  %s3 = inlined_call_operand.hbm [shape: f32[2,128,128], index: 3, kind: input, shape index: {}]
  %s4 = inlined_call_operand.vmem [shape: f32[2,1,128], index: 4, kind: input, shape index: {}]
  %s5 = inlined_call_operand.vmem [shape: f32[128,2], index: 5, kind: input, shape index: {}]
  %s6 = inlined_call_operand.vmem [shape: f32[1,2], index: 6, kind: input, shape index: {}]
  %s7 = inlined_call_operand.vmem [shape: f32[8,2], index: 7, kind: output, shape index: {}]
  %s8 = sld [smem:[#allocation0]]
  $region42: #{tpu_custom_call.1} parent=0
    _
  %s10 = ssub.s32 1, %s8
  %s11 = scalar_select 0, %s10, %s8
  $region1: #{tpu_custom_call.1} parent=0
    #allocation2 [shape = 'u8[131072]{0}', space=vmem, size = 0x20000, scoped, tag = 'input window, operand 3, single buffered']
    #allocation3 [shape = 's32[1]{0}', space=sflag, size = 0x4, scoped, tag = 'scoped memory for tpu_custom_call.1']
    %12 = vsyncpa [#allocation3], 0
    // Predicated region
    $region2: #{tpu_custom_call.1} parent=1 // pred_check
      _
    $region3: #{tpu_custom_call.1} parent=1 // pred_check_branch
      %14 = sbr.rel (0) target = $region5
    $region4: #{tpu_custom_call.1} parent=1 // pred_region
      _
    $region5: #{tpu_custom_call.1} parent=1 // pred_fallthru
      _
    // Predicated region
    $region6: #{tpu_custom_call.1} parent=1 // pred_check
      _
    $region7: #{tpu_custom_call.1} parent=1 // pred_check_branch
      %16 = sbr.rel (0) target = $region9
    $region8: #{tpu_custom_call.1} parent=1 // pred_region
      _
    $region9: #{tpu_custom_call.1} parent=1 // pred_fallthru
      _
    // Predicated region
    $region10: #{tpu_custom_call.1} parent=1 // pred_check
      _
    $region11: #{tpu_custom_call.1} parent=1 // pred_check_branch
      %18 = sbr.rel (0) target = $region13
    $region12: #{tpu_custom_call.1} parent=1 // pred_region
      _
    $region13: #{tpu_custom_call.1} parent=1 // pred_fallthru
      _
    // Predicated region
    $region14: #{tpu_custom_call.1} parent=1 // pred_check
      _
    $region15: #{tpu_custom_call.1} parent=1 // pred_check_branch
      %20 = sbr.rel (0) target = $region17
    $region16: #{tpu_custom_call.1} parent=1 // pred_region
      %s22 = ssub.s32 4096, 4096
      %23 = vsyncadd [#allocation3], %s22
      %s24 = sshll.u32 [#allocation2], 4
      %s25 = int_to_ptr.vmem [resolvable:$true] %s24
      %30 = dma.hbm_to_vmem [thread:$0]  %s3, 4096, %s25, [#allocation3], 128, 128, 8
    $region17: #{tpu_custom_call.1} parent=1 // pred_fallthru
      _
    // Predicated region
    $region18: #{tpu_custom_call.1} parent=1 // pred_check
      _
    $region19: #{tpu_custom_call.1} parent=1 // pred_check_branch
      %32 = sbr.rel (0) target = $region21
    $region20: #{tpu_custom_call.1} parent=1 // pred_region
      _
    $region21: #{tpu_custom_call.1} parent=1 // pred_fallthru
      _
    // Predicated region
    $region22: #{tpu_custom_call.1} parent=1 // pred_check
      _
    $region23: #{tpu_custom_call.1} parent=1 // pred_check_branch
      %34 = sbr.rel (0) target = $region25
    $region24: #{tpu_custom_call.1} parent=1 // pred_region
      _
    $region25: #{tpu_custom_call.1} parent=1 // pred_fallthru
      _
    // Predicated region
    $region26: #{tpu_custom_call.1} parent=1 // pred_check
      _
    $region27: #{tpu_custom_call.1} parent=1 // pred_check_branch
      %36 = sbr.rel (0) target = $region29
    $region28: #{tpu_custom_call.1} parent=1 // pred_region
      _
    $region29: #{tpu_custom_call.1} parent=1 // pred_fallthru
      _
    // Predicated region
    $region30: #{tpu_custom_call.1} parent=1 // pred_check
      _
    $region31: #{tpu_custom_call.1} parent=1 // pred_check_branch
      %38 = sbr.rel (0) target = $region33
    $region32: #{tpu_custom_call.1} parent=1 // pred_region
      %39 = dma.done [#allocation3], 4096
    $region33: #{tpu_custom_call.1} parent=1 // pred_fallthru
      _
    %v40 = vld [vmem:[%s0] sm:$0xff]
    %v41 = vld [vmem:[%s1] sm:$0xf]
    %v42 = vld [vmem:[%s2] sm:$0x1]
    %v44 = vlaneseq
    %v45 = vshrl.u32 %v44, 7
    %v46 = vsub.s32 0, %v45
    %v47 = vrot.slane %v42, %v46
    %vm49 = vcmask 31744
    %v51 = vsel %vm49, %v40, 0
    %vm53 = vcmask 1043456
    %v55 = vsel %vm53, %v41, 0
    %57 = vmatprep.subr.mxu0 0.0
    %58 = vmatpush1.msra.mxu0 %v55
    %59 = vmatprep.subr.mxu0 0.0
    %60 = vmatpush1.msra.mxu0 0.0
    %61 = vmatprep.subr.mxu0 0.0
    %62 = vmatpush1.msra.mxu0 0.0
    %63 = vmatprep.subr.mxu0 0.0
    %64 = vmatpush1.msra.mxu0 0.0
    %65 = vmatprep.subr.mxu0 0.0
    %66 = vmatpush1.msra.mxu0 0.0
    %67 = vmatprep.subr.mxu0 0.0
    %68 = vmatpush1.msra.mxu0 0.0
    %69 = vmatprep.subr.mxu0 0.0
    %70 = vmatpush1.msra.mxu0 0.0
    %71 = vmatprep.subr.mxu0 0.0
    %72 = vmatpush1.msra.mxu0 0.0
    %73 = vmatprep.subr.mxu0 0.0
    %74 = vmatpush1.msra.mxu0 0.0
    %75 = vmatprep.subr.mxu0 0.0
    %76 = vmatpush1.msra.mxu0 0.0
    %77 = vmatprep.subr.mxu0 0.0
    %78 = vmatpush1.msra.mxu0 0.0
    %79 = vmatprep.subr.mxu0 0.0
    %80 = vmatpush1.msra.mxu0 0.0
    %81 = vmatprep.subr.mxu0 0.0
    %82 = vmatpush1.msra.mxu0 0.0
    %83 = vmatprep.subr.mxu0 0.0
    %84 = vmatpush1.msra.mxu0 0.0
    %85 = vmatprep.subr.mxu0 0.0
    %86 = vmatpush1.msra.mxu0 0.0
    %87 = vmatprep.subr.mxu0 0.0
    %88 = vmatpush1.msra.mxu0 0.0
    %89 = vmatprep.subr.mxu0 0.0
    %90 = vmatpush1.msra.mxu0 0.0
    %91 = vmatprep.subr.mxu0 0.0
    %92 = vmatpush1.msra.mxu0 0.0
    %93 = vmatprep.subr.mxu0 0.0
    %94 = vmatpush1.msra.mxu0 0.0
    %95 = vmatprep.subr.mxu0 0.0
    %96 = vmatpush1.msra.mxu0 0.0
    %97 = vmatprep.subr.mxu0 0.0
    %98 = vmatpush1.msra.mxu0 0.0
    %99 = vmatprep.subr.mxu0 0.0
    %100 = vmatpush1.msra.mxu0 0.0
    %101 = vmatprep.subr.mxu0 0.0
    %102 = vmatpush1.msra.mxu0 0.0
    %103 = vmatprep.subr.mxu0 0.0
    %104 = vmatpush1.msra.mxu0 0.0
    %105 = vmatprep.subr.mxu0 0.0
    %106 = vmatpush1.msra.mxu0 0.0
    %107 = vmatprep.subr.mxu0 0.0
    %108 = vmatpush1.msra.mxu0 0.0
    %109 = vmatprep.subr.mxu0 0.0
    %110 = vmatpush1.msra.mxu0 0.0
    %111 = vmatprep.subr.mxu0 0.0
    %112 = vmatpush1.msra.mxu0 0.0
    %113 = vmatprep.subr.mxu0 0.0
    %114 = vmatpush1.msra.mxu0 0.0
    %115 = vmatprep.subr.mxu0 0.0
    %116 = vmatpush1.msra.mxu0 0.0
    %117 = vmatprep.subr.mxu0 0.0
    %118 = vmatpush1.msra.mxu0 0.0
    %119 = vmatprep.subr.mxu0 0.0
    %120 = vmatpush1.msra.mxu0 0.0
    %121 = vmatprep.mubr.f32.mxu0 0.0
    %122 = vmatmul.mubr.f32.gmra.mrb[0].mxu0 %v51
    %v123 = vpop.f32.mrb[0].mxu0
    %v124 = vadd.f32 %v47, %v123
    %v125 = vpop.f32.mrb[0].mxu0
    %126 = vdwg.mxu0
    %v127 = vtanh.pop %v124
    %v128 = vld [vmem:[#allocation2] sm:$0xff]
    %v129 = vld [vmem:[#allocation2 + $0x8] sm:$0xff]
    %v130 = vld [vmem:[#allocation2 + $0x10] sm:$0xff]
    %v131 = vld [vmem:[#allocation2 + $0x18] sm:$0xff]
    %v132 = vld [vmem:[#allocation2 + $0x20] sm:$0xff]
    %v133 = vld [vmem:[#allocation2 + $0x28] sm:$0xff]
    %v134 = vld [vmem:[#allocation2 + $0x30] sm:$0xff]
    %v135 = vld [vmem:[#allocation2 + $0x38] sm:$0xff]
    %v136 = vld [vmem:[#allocation2 + $0x40] sm:$0xff]
    %v137 = vld [vmem:[#allocation2 + $0x48] sm:$0xff]
    %v138 = vld [vmem:[#allocation2 + $0x50] sm:$0xff]
    %v139 = vld [vmem:[#allocation2 + $0x58] sm:$0xff]
    %v140 = vld [vmem:[#allocation2 + $0x60] sm:$0xff]
    %v141 = vld [vmem:[#allocation2 + $0x68] sm:$0xff]
    %v142 = vld [vmem:[#allocation2 + $0x70] sm:$0xff]
    %v143 = vld [vmem:[#allocation2 + $0x78] sm:$0xff]
    %v144 = vld [vmem:[%s4] sm:$0x1]
    %v146 = vlaneseq
    %v147 = vshrl.u32 %v146, 7
    %v148 = vsub.s32 0, %v147
    %v149 = vrot.slane %v144, %v148
    %151 = vmatprep.subr.mxu0 0.0
    %152 = vmatpush1.msra.mxu0 %v128
    %153 = vmatprep.subr.mxu0 0.0
    %154 = vmatpush1.msra.mxu0 %v129
    %155 = vmatprep.subr.mxu0 0.0
    %156 = vmatpush1.msra.mxu0 %v130
    %157 = vmatprep.subr.mxu0 0.0
    %158 = vmatpush1.msra.mxu0 %v131
    %159 = vmatprep.subr.mxu0 0.0
    %160 = vmatpush1.msra.mxu0 %v132
    %161 = vmatprep.subr.mxu0 0.0
    %162 = vmatpush1.msra.mxu0 %v133
    %163 = vmatprep.subr.mxu0 0.0
    %164 = vmatpush1.msra.mxu0 %v134
    %165 = vmatprep.subr.mxu0 0.0
    %166 = vmatpush1.msra.mxu0 %v135
    %167 = vmatprep.subr.mxu0 0.0
    %168 = vmatpush1.msra.mxu0 %v136
    %169 = vmatprep.subr.mxu0 0.0
    %170 = vmatpush1.msra.mxu0 %v137
    %171 = vmatprep.subr.mxu0 0.0
    %172 = vmatpush1.msra.mxu0 %v138
    %173 = vmatprep.subr.mxu0 0.0
    %174 = vmatpush1.msra.mxu0 %v139
    %175 = vmatprep.subr.mxu0 0.0
    %176 = vmatpush1.msra.mxu0 %v140
    %177 = vmatprep.subr.mxu0 0.0
    %178 = vmatpush1.msra.mxu0 %v141
    %179 = vmatprep.subr.mxu0 0.0
    %180 = vmatpush1.msra.mxu0 %v142
    %181 = vmatprep.subr.mxu0 0.0
    %182 = vmatpush1.msra.mxu0 %v143
    %183 = vmatprep.subr.mxu0 0.0
    %184 = vmatpush1.msra.mxu0 0.0
    %185 = vmatprep.subr.mxu0 0.0
    %186 = vmatpush1.msra.mxu0 0.0
    %187 = vmatprep.subr.mxu0 0.0
    %188 = vmatpush1.msra.mxu0 0.0
    %189 = vmatprep.subr.mxu0 0.0
    %190 = vmatpush1.msra.mxu0 0.0
    %191 = vmatprep.subr.mxu0 0.0
    %192 = vmatpush1.msra.mxu0 0.0
    %193 = vmatprep.subr.mxu0 0.0
    %194 = vmatpush1.msra.mxu0 0.0
    %195 = vmatprep.subr.mxu0 0.0
    %196 = vmatpush1.msra.mxu0 0.0
    %197 = vmatprep.subr.mxu0 0.0
    %198 = vmatpush1.msra.mxu0 0.0
    %199 = vmatprep.subr.mxu0 0.0
    %200 = vmatpush1.msra.mxu0 0.0
    %201 = vmatprep.subr.mxu0 0.0
    %202 = vmatpush1.msra.mxu0 0.0
    %203 = vmatprep.subr.mxu0 0.0
    %204 = vmatpush1.msra.mxu0 0.0
    %205 = vmatprep.subr.mxu0 0.0
    %206 = vmatpush1.msra.mxu0 0.0
    %207 = vmatprep.subr.mxu0 0.0
    %208 = vmatpush1.msra.mxu0 0.0
    %209 = vmatprep.subr.mxu0 0.0
    %210 = vmatpush1.msra.mxu0 0.0
    %211 = vmatprep.subr.mxu0 0.0
    %212 = vmatpush1.msra.mxu0 0.0
    %213 = vmatprep.subr.mxu0 0.0
    %214 = vmatpush1.msra.mxu0 0.0
    %215 = vmatprep.mubr.f32.mxu0 0.0
    %216 = vmatmul.mubr.f32.gmra.mrb[0].mxu0 %v127
    %v217 = vpop.f32.mrb[0].mxu0
    %v218 = vadd.f32 %v149, %v217
    %v219 = vpop.f32.mrb[0].mxu0
    %220 = vdwg.mxu0
    %v221 = vtanh.pop %v218
    %s222 = scalar_lea.vmem [#allocation2], 128
    %v223 = vld [vmem:[%s222] sm:$0xff]
    %v224 = vld [vmem:[%s222 + $0x8] sm:$0xff]
    %v225 = vld [vmem:[%s222 + $0x10] sm:$0xff]
    %v226 = vld [vmem:[%s222 + $0x18] sm:$0xff]
    %v227 = vld [vmem:[%s222 + $0x20] sm:$0xff]
    %v228 = vld [vmem:[%s222 + $0x28] sm:$0xff]
    %v229 = vld [vmem:[%s222 + $0x30] sm:$0xff]
    %v230 = vld [vmem:[%s222 + $0x38] sm:$0xff]
    %v231 = vld [vmem:[%s222 + $0x40] sm:$0xff]
    %v232 = vld [vmem:[%s222 + $0x48] sm:$0xff]
    %v233 = vld [vmem:[%s222 + $0x50] sm:$0xff]
    %v234 = vld [vmem:[%s222 + $0x58] sm:$0xff]
    %v235 = vld [vmem:[%s222 + $0x60] sm:$0xff]
    %v236 = vld [vmem:[%s222 + $0x68] sm:$0xff]
    %v237 = vld [vmem:[%s222 + $0x70] sm:$0xff]
    %v238 = vld [vmem:[%s222 + $0x78] sm:$0xff]
    %s239 = scalar_lea.vmem %s4, 1
    %v240 = vld [vmem:[%s239] sm:$0x1]
    %v242 = vlaneseq
    %v243 = vshrl.u32 %v242, 7
    %v244 = vsub.s32 0, %v243
    %v245 = vrot.slane %v240, %v244
    %247 = vmatprep.subr.mxu0 0.0
    %248 = vmatpush1.msra.mxu0 %v223
    %249 = vmatprep.subr.mxu0 0.0
    %250 = vmatpush1.msra.mxu0 %v224
    %251 = vmatprep.subr.mxu0 0.0
    %252 = vmatpush1.msra.mxu0 %v225
    %253 = vmatprep.subr.mxu0 0.0
    %254 = vmatpush1.msra.mxu0 %v226
    %255 = vmatprep.subr.mxu0 0.0
    %256 = vmatpush1.msra.mxu0 %v227
    %257 = vmatprep.subr.mxu0 0.0
    %258 = vmatpush1.msra.mxu0 %v228
    %259 = vmatprep.subr.mxu0 0.0
    %260 = vmatpush1.msra.mxu0 %v229
    %261 = vmatprep.subr.mxu0 0.0
    %262 = vmatpush1.msra.mxu0 %v230
    %263 = vmatprep.subr.mxu0 0.0
    %264 = vmatpush1.msra.mxu0 %v231
    %265 = vmatprep.subr.mxu0 0.0
    %266 = vmatpush1.msra.mxu0 %v232
    %267 = vmatprep.subr.mxu0 0.0
    %268 = vmatpush1.msra.mxu0 %v233
    %269 = vmatprep.subr.mxu0 0.0
    %270 = vmatpush1.msra.mxu0 %v234
    %271 = vmatprep.subr.mxu0 0.0
    %272 = vmatpush1.msra.mxu0 %v235
    %273 = vmatprep.subr.mxu0 0.0
    %274 = vmatpush1.msra.mxu0 %v236
    %275 = vmatprep.subr.mxu0 0.0
    %276 = vmatpush1.msra.mxu0 %v237
    %277 = vmatprep.subr.mxu0 0.0
    %278 = vmatpush1.msra.mxu0 %v238
    %279 = vmatprep.subr.mxu0 0.0
    %280 = vmatpush1.msra.mxu0 0.0
    %281 = vmatprep.subr.mxu0 0.0
    %282 = vmatpush1.msra.mxu0 0.0
    %283 = vmatprep.subr.mxu0 0.0
    %284 = vmatpush1.msra.mxu0 0.0
    %285 = vmatprep.subr.mxu0 0.0
    %286 = vmatpush1.msra.mxu0 0.0
    %287 = vmatprep.subr.mxu0 0.0
    %288 = vmatpush1.msra.mxu0 0.0
    %289 = vmatprep.subr.mxu0 0.0
    %290 = vmatpush1.msra.mxu0 0.0
    %291 = vmatprep.subr.mxu0 0.0
    %292 = vmatpush1.msra.mxu0 0.0
    %293 = vmatprep.subr.mxu0 0.0
    %294 = vmatpush1.msra.mxu0 0.0
    %295 = vmatprep.subr.mxu0 0.0
    %296 = vmatpush1.msra.mxu0 0.0
    %297 = vmatprep.subr.mxu0 0.0
    %298 = vmatpush1.msra.mxu0 0.0
    %299 = vmatprep.subr.mxu0 0.0
    %300 = vmatpush1.msra.mxu0 0.0
    %301 = vmatprep.subr.mxu0 0.0
    %302 = vmatpush1.msra.mxu0 0.0
    %303 = vmatprep.subr.mxu0 0.0
    %304 = vmatpush1.msra.mxu0 0.0
    %305 = vmatprep.subr.mxu0 0.0
    %306 = vmatpush1.msra.mxu0 0.0
    %307 = vmatprep.subr.mxu0 0.0
    %308 = vmatpush1.msra.mxu0 0.0
    %309 = vmatprep.subr.mxu0 0.0
    %310 = vmatpush1.msra.mxu0 0.0
    %311 = vmatprep.mubr.f32.mxu0 0.0
    %312 = vmatmul.mubr.f32.gmra.mrb[0].mxu0 %v221
    %v313 = vpop.f32.mrb[0].mxu0
    %v314 = vadd.f32 %v245, %v313
    %v315 = vpop.f32.mrb[0].mxu0
    %316 = vdwg.mxu0
    %v317 = vtanh.pop %v314
    %v318 = vld [vmem:[%s5] sm:$0xff]
    %v319 = vld [vmem:[%s5 + $0x8] sm:$0xff]
    %v320 = vld [vmem:[%s5 + $0x10] sm:$0xff]
    %v321 = vld [vmem:[%s5 + $0x18] sm:$0xff]
    %v322 = vld [vmem:[%s5 + $0x20] sm:$0xff]
    %v323 = vld [vmem:[%s5 + $0x28] sm:$0xff]
    %v324 = vld [vmem:[%s5 + $0x30] sm:$0xff]
    %v325 = vld [vmem:[%s5 + $0x38] sm:$0xff]
    %v326 = vld [vmem:[%s5 + $0x40] sm:$0xff]
    %v327 = vld [vmem:[%s5 + $0x48] sm:$0xff]
    %v328 = vld [vmem:[%s5 + $0x50] sm:$0xff]
    %v329 = vld [vmem:[%s5 + $0x58] sm:$0xff]
    %v330 = vld [vmem:[%s5 + $0x60] sm:$0xff]
    %v331 = vld [vmem:[%s5 + $0x68] sm:$0xff]
    %v332 = vld [vmem:[%s5 + $0x70] sm:$0xff]
    %v333 = vld [vmem:[%s5 + $0x78] sm:$0xff]
    %v334 = vld [vmem:[%s6] sm:$0x1]
    %v336 = vlaneseq
    %v337 = vshrl.u32 %v336, 7
    %v338 = vsub.s32 0, %v337
    %v339 = vrot.slane %v334, %v338
    %341 = vmatprep.subr.mxu0 0.0
    %342 = vmatpush1.msra.mxu0 %v318
    %343 = vmatprep.subr.mxu0 0.0
    %344 = vmatpush1.msra.mxu0 %v319
    %345 = vmatprep.subr.mxu0 0.0
    %346 = vmatpush1.msra.mxu0 %v320
    %347 = vmatprep.subr.mxu0 0.0
    %348 = vmatpush1.msra.mxu0 %v321
    %349 = vmatprep.subr.mxu0 0.0
    %350 = vmatpush1.msra.mxu0 %v322
    %351 = vmatprep.subr.mxu0 0.0
    %352 = vmatpush1.msra.mxu0 %v323
    %353 = vmatprep.subr.mxu0 0.0
    %354 = vmatpush1.msra.mxu0 %v324
    %355 = vmatprep.subr.mxu0 0.0
    %356 = vmatpush1.msra.mxu0 %v325
    %357 = vmatprep.subr.mxu0 0.0
    %358 = vmatpush1.msra.mxu0 %v326
    %359 = vmatprep.subr.mxu0 0.0
    %360 = vmatpush1.msra.mxu0 %v327
    %361 = vmatprep.subr.mxu0 0.0
    %362 = vmatpush1.msra.mxu0 %v328
    %363 = vmatprep.subr.mxu0 0.0
    %364 = vmatpush1.msra.mxu0 %v329
    %365 = vmatprep.subr.mxu0 0.0
    %366 = vmatpush1.msra.mxu0 %v330
    %367 = vmatprep.subr.mxu0 0.0
    %368 = vmatpush1.msra.mxu0 %v331
    %369 = vmatprep.subr.mxu0 0.0
    %370 = vmatpush1.msra.mxu0 %v332
    %371 = vmatprep.subr.mxu0 0.0
    %372 = vmatpush1.msra.mxu0 %v333
    %373 = vmatprep.subr.mxu0 0.0
    %374 = vmatpush1.msra.mxu0 0.0
    %375 = vmatprep.subr.mxu0 0.0
    %376 = vmatpush1.msra.mxu0 0.0
    %377 = vmatprep.subr.mxu0 0.0
    %378 = vmatpush1.msra.mxu0 0.0
    %379 = vmatprep.subr.mxu0 0.0
    %380 = vmatpush1.msra.mxu0 0.0
    %381 = vmatprep.subr.mxu0 0.0
    %382 = vmatpush1.msra.mxu0 0.0
    %383 = vmatprep.subr.mxu0 0.0
    %384 = vmatpush1.msra.mxu0 0.0
    %385 = vmatprep.subr.mxu0 0.0
    %386 = vmatpush1.msra.mxu0 0.0
    %387 = vmatprep.subr.mxu0 0.0
    %388 = vmatpush1.msra.mxu0 0.0
    %389 = vmatprep.subr.mxu0 0.0
    %390 = vmatpush1.msra.mxu0 0.0
    %391 = vmatprep.subr.mxu0 0.0
    %392 = vmatpush1.msra.mxu0 0.0
    %393 = vmatprep.subr.mxu0 0.0
    %394 = vmatpush1.msra.mxu0 0.0
    %395 = vmatprep.subr.mxu0 0.0
    %396 = vmatpush1.msra.mxu0 0.0
    %397 = vmatprep.subr.mxu0 0.0
    %398 = vmatpush1.msra.mxu0 0.0
    %399 = vmatprep.subr.mxu0 0.0
    %400 = vmatpush1.msra.mxu0 0.0
    %401 = vmatprep.subr.mxu0 0.0
    %402 = vmatpush1.msra.mxu0 0.0
    %403 = vmatprep.subr.mxu0 0.0
    %404 = vmatpush1.msra.mxu0 0.0
    %405 = vmatprep.mubr.f32.mxu0 0.0
    %406 = vmatmul.mubr.f32.gmra.mrb[0].mxu0 %v317
    %v407 = vpop.f32.mrb[0].mxu0
    %v408 = vadd.f32 %v339, %v407
    %v409 = vpop.f32.mrb[0].mxu0
    %410 = vdwg.mxu0
    %vm411 = vcmask 15360
    %412 = vst.msk [vmem:[%s7] sm:$0xff] %vm411, %v408
    // Predicated region
    $region34: #{tpu_custom_call.1} parent=1 // pred_check
      _
    $region35: #{tpu_custom_call.1} parent=1 // pred_check_branch
      %414 = sbr.rel (0) target = $region37
    $region36: #{tpu_custom_call.1} parent=1 // pred_region
      _
    $region37: #{tpu_custom_call.1} parent=1 // pred_fallthru
      _
    // Predicated region
    $region38: #{tpu_custom_call.1} parent=1 // pred_check
      _
    $region39: #{tpu_custom_call.1} parent=1 // pred_check_branch
      %416 = sbr.rel (0) target = $region41
    $region40: #{tpu_custom_call.1} parent=1 // pred_region
      _
    $region41: #{tpu_custom_call.1} parent=1 // pred_fallthru
      _
    %417 = vsyncpa [#allocation3], 1

</llo_original>
